<compile_context>
chip_gen: v7x
topology: tpu7x:2x2x1
jax: 0.10.0
libtpu: 0.0.40
codegen_flags: <defaults>
</compile_context>

<pallas_src>
import functools

import jax
import jax.numpy as jnp
from jax import lax
from jax.experimental import pallas as pl
from jax.experimental.pallas import tpu as pltpu


MS_PAD = 128        # max_states padded to one lane width (contraction K)
SLAB = 128          # packed parameter slab is (128, 128) f32 = one 64 KiB tile
BATCH_TILE = 8      # sublane-aligned batch tile; grid iterates batch tiles


def _round_up(x, m):
    return (x + m - 1) // m * m


def _make_kernel(bt, hidden):
    # Static lane offsets of each segment inside the (128, 128) slab.
    l_T = 0                 # lanes [0, H)      rows [0, MS_PAD)   : emb@w1 + b1
    l_w2 = hidden           # lanes [H, 2H)     rows [0, H)        : w2
    l_b2 = 2 * hidden       # lanes [2H, 3H)    row 0              : b2
    l_w3 = 3 * hidden       # lanes [3H, 4H)    row 0: w3, row 1: b3 (bcast)

    def kernel(idx_ref, p_ref, o_ref):
        # --- one-hot over the 128-padded state dimension --------------------
        idx = idx_ref[...]                                       # (bt, 1) int32
        iota = lax.broadcasted_iota(jnp.int32, (bt, MS_PAD), 1)
        one_hot = (iota == idx).astype(jnp.float32)              # (bt, 128)

        # --- static slices of the lane-dense packed slab --------------------
        T = p_ref[:, l_T:l_T + hidden]                    # (128, H): emb@w1 + b1
        w2 = p_ref[0:hidden, l_w2:l_w2 + hidden]          # (H, H)
        b2 = p_ref[0:1, l_b2:l_b2 + hidden]               # (1, H)
        w3b3 = p_ref[0:2, l_w3:l_w3 + hidden]             # (2, H): row0=w3, row1=b3

        # --- (emb + fc1 + b1 folded) -> Tanh -> fc2 -> Tanh -> fc3 ----------
        h1 = jnp.tanh(jnp.dot(one_hot, T, preferred_element_type=jnp.float32))
        h2 = jnp.tanh(jnp.dot(h1, w2, preferred_element_type=jnp.float32) + b2)
        # fc3 is a (H -> 1) projection: VPU multiply + lane reduce (MXU skipped)
        out = jnp.sum(h2 * w3b3[0:1, :], axis=-1, keepdims=True) + w3b3[1:2, 0:1]
        o_ref[...] = out.astype(o_ref.dtype)                     # (bt, 1)

    return kernel


def pack_params(params):
    """Fold emb+b1 into fc1 and pack all parameters into one (128,128) slab."""
    emb, w1, b1, w2, b2, w3, b3 = params
    max_states, embed_dim = emb.shape
    hidden = w1.shape[1]
    assert max_states <= MS_PAD, "max_states must fit in one lane width"
    assert 4 * hidden <= SLAB, "hidden too large for side-by-side lane packing"

    # Exact folds (valid idx => one-hot row sums to exactly 1):
    #   one_hot @ (emb @ w1 + b1) == (one_hot @ emb) @ w1 + b1
    T = jnp.dot(emb, w1) + b1.reshape(1, hidden)          # (max_states, hidden)

    slab = jnp.zeros((SLAB, SLAB), jnp.float32)
    slab = slab.at[:max_states, 0:hidden].set(T)
    slab = slab.at[0:hidden, hidden:2 * hidden].set(w2)
    slab = slab.at[0:1, 2 * hidden:3 * hidden].set(b2.reshape(1, hidden))
    slab = slab.at[0:1, 3 * hidden:4 * hidden].set(w3.reshape(1, hidden))
    slab = slab.at[1:2, 3 * hidden:4 * hidden].set(
        jnp.full((1, hidden), b3.reshape(()), jnp.float32))
    return slab, hidden


@functools.partial(jax.jit, static_argnames=("hidden",))
def _critic_call(x_idx, slab, hidden):
    batch = x_idx.shape[0]
    bt = BATCH_TILE
    padded = _round_up(batch, bt)
    if padded != batch:
        x_idx = jnp.pad(x_idx, ((0, padded - batch), (0, 0)))   # idx 0, rows dropped

    flops = 2 * padded * (MS_PAD * hidden + hidden * hidden + hidden)
    bytes_accessed = slab.size * 4 + padded * 4 + padded * 4

    out = pl.pallas_call(
        _make_kernel(bt, hidden),
        out_shape=jax.ShapeDtypeStruct((padded, 1), jnp.float32),
        grid_spec=pltpu.PrefetchScalarGridSpec(
            num_scalar_prefetch=0,
            grid=(padded // bt,),
            in_specs=[
                pl.BlockSpec((bt, 1), lambda i: (i, 0)),        # state indices
                pl.BlockSpec((SLAB, SLAB), lambda i: (0, 0)),   # slab: VMEM-resident
            ],
            out_specs=pl.BlockSpec((bt, 1), lambda i: (i, 0)),
        ),
        compiler_params=pltpu.CompilerParams(
            dimension_semantics=("parallel",)),                  # v7x megacore
        cost_estimate=pl.CostEstimate(
            flops=flops,
            transcendentals=2 * padded * hidden,
            bytes_accessed=bytes_accessed,
        ),
    )(x_idx, slab)
    return out[:batch]


def critic_forward(x_idx, packed):
    """x_idx: (B, 1) int32 state indices.  Returns (B, 1) float32 values."""
    slab, hidden = packed
    return _critic_call(x_idx, slab, hidden)


def init_params(key, hidden_dim=32, max_states=100, embed_dim=1):
    """Deterministic synthetic parameters mirroring the torch module shapes."""
    ks = jax.random.split(key, 7)
    emb = jax.random.normal(ks[0], (max_states, embed_dim), jnp.float32)  # N(0,1)

    def linear(kw, kb, fan_in, fan_out):
        bound = 1.0 / jnp.sqrt(fan_in)
        w = jax.random.uniform(kw, (fan_in, fan_out), jnp.float32, -bound, bound)
        b = jax.random.uniform(kb, (1, fan_out), jnp.float32, -bound, bound)
        return w, b

    w1, b1 = linear(ks[1], ks[2], embed_dim, hidden_dim)
    w2, b2 = linear(ks[3], ks[4], hidden_dim, hidden_dim)
    w3, b3 = linear(ks[5], ks[6], hidden_dim, 1)
    return (emb, w1, b1, w2, b2, w3, b3)


def critic_reference(x_idx, params):
    """Pure-JAX reference matching the torch forward exactly."""
    emb, w1, b1, w2, b2, w3, b3 = params
    x = jnp.take(emb, x_idx[:, 0], axis=0)     # (B, embed_dim) == squeeze(-2)
    h1 = jnp.tanh(x @ w1 + b1)
    h2 = jnp.tanh(h1 @ w2 + b2)
    return h2 @ w3 + b3


if __name__ == "__main__":
    key = jax.random.PRNGKey(0)
    k_params, k_x = jax.random.split(key)

    hidden_dim, max_states, embed_dim = 32, 100, 1
    batch = 8

    params = init_params(k_params, hidden_dim, max_states, embed_dim)
    packed = pack_params(params)

    # state indices in [0, max_states), shape (B, 1) like the torch usage
    x_idx = jax.random.randint(k_x, (batch, 1), 0, max_states, jnp.int32)

    out = critic_forward(x_idx, packed)
    out = jax.block_until_ready(out)

    ref = critic_reference(x_idx, params)
    assert out.shape == (batch, 1), out.shape
    assert jnp.allclose(out, ref, atol=1e-5, rtol=1e-5), (out, ref)

    print("KERNEL_OK")
</pallas_src>

<mosaic_0001>
module attributes {stable_mosaic.version = 11 : i64} {
  func.func @kernel(%arg0: i32, %arg1: memref<8x1xi32, #tpu.memory_space<vmem>>, %arg2: memref<128x128xf32, #tpu.memory_space<vmem>>, %arg3: memref<8x1xf32, #tpu.memory_space<vmem>>) attributes {dimension_semantics = [#tpu.dimension_semantics<parallel>], iteration_bounds = array<i64: 1>, scalar_prefetch = 0 : i64, scratch_operands = 0 : i64, tpu.core_type = #tpu.core_type<tc>, window_params = [{transform_indices = @transform_0, window_bounds = array<i64: 8, 1>}, {pipeline_mode = #tpu.pipeline_mode<synchronous>, transform_indices = @transform_1, window_bounds = array<i64: 128, 128>}, {transform_indices = @transform_2, window_bounds = array<i64: 8, 1>}]} {
    %c0 = arith.constant 0 : index
    %c0_0 = arith.constant 0 : index
    %0 = vector.load %arg1[%c0, %c0_0] : memref<8x1xi32, #tpu.memory_space<vmem>>, vector<8x1xi32>
    %1 = tpu.iota {dimensions = array<i32: 1>} : vector<8x128xi32>
    %2 = vector.broadcast %0 : vector<8x1xi32> to vector<8x128xi32>
    %3 = arith.cmpi eq, %1, %2 : vector<8x128xi32>
    %4 = arith.extui %3 : vector<8x128xi1> to vector<8x128xi32>
    %5 = arith.sitofp %4 : vector<8x128xi32> to vector<8x128xf32>
    %c0_1 = arith.constant 0 : index
    %c0_2 = arith.constant 0 : index
    %6 = vector.load %arg2[%c0_1, %c0_2] : memref<128x128xf32, #tpu.memory_space<vmem>>, vector<128x32xf32>
    %c0_3 = arith.constant 0 : index
    %c32 = arith.constant 32 : index
    %7 = vector.load %arg2[%c0_3, %c32] : memref<128x128xf32, #tpu.memory_space<vmem>>, vector<32x32xf32>
    %c0_4 = arith.constant 0 : index
    %c64 = arith.constant 64 : index
    %8 = vector.load %arg2[%c0_4, %c64] : memref<128x128xf32, #tpu.memory_space<vmem>>, vector<1x32xf32>
    %c0_5 = arith.constant 0 : index
    %c96 = arith.constant 96 : index
    %9 = vector.load %arg2[%c0_5, %c96] : memref<128x128xf32, #tpu.memory_space<vmem>>, vector<2x32xf32>
    %cst = arith.constant dense<0.000000e+00> : vector<8x32xf32>
    %10 = tpu.matmul %5, %6, %cst {dimension_numbers = #tpu.dot_dimension_numbers<[1], [0], [0], [1], [0, 0, 1, 1], [], []>} : vector<8x128xf32>, vector<128x32xf32>, vector<8x32xf32> -> vector<8x32xf32>
    %11 = math.tanh %10 : vector<8x32xf32>
    %cst_6 = arith.constant dense<0.000000e+00> : vector<8x32xf32>
    %12 = tpu.matmul %11, %7, %cst_6 {dimension_numbers = #tpu.dot_dimension_numbers<[1], [0], [0], [1], [0, 0, 1, 1], [], []>} : vector<8x32xf32>, vector<32x32xf32>, vector<8x32xf32> -> vector<8x32xf32>
    %13 = vector.broadcast %8 : vector<1x32xf32> to vector<8x32xf32>
    %14 = arith.addf %12, %13 : vector<8x32xf32>
    %15 = math.tanh %14 : vector<8x32xf32>
    %16 = vector.extract_strided_slice %9 {offsets = [0, 0], sizes = [1, 32], strides = [1, 1]} : vector<2x32xf32> to vector<1x32xf32>
    %17 = vector.broadcast %16 : vector<1x32xf32> to vector<8x32xf32>
    %18 = arith.mulf %15, %17 : vector<8x32xf32>
    %cst_7 = arith.constant dense<0.000000e+00> : vector<8xf32>
    %19 = vector.multi_reduction <add>, %18, %cst_7 [1] : vector<8x32xf32> to vector<8xf32>
    %20 = vector.shape_cast %19 : vector<8xf32> to vector<8x1xf32>
    %21 = vector.extract_strided_slice %9 {offsets = [1, 0], sizes = [1, 1], strides = [1, 1]} : vector<2x32xf32> to vector<1x1xf32>
    %22 = vector.broadcast %21 : vector<1x1xf32> to vector<8x1xf32>
    %23 = arith.addf %20, %22 : vector<8x1xf32>
    %c0_8 = arith.constant 0 : index
    %c0_9 = arith.constant 0 : index
    %24 = vector.load %arg3[%c0_8, %c0_9] : memref<8x1xf32, #tpu.memory_space<vmem>>, vector<8x1xf32>
    tpu.vector_store %arg3[%c0_8, %c0_9], %23 {strides = array<i32>} : memref<8x1xf32, #tpu.memory_space<vmem>>, vector<8x1xf32>,
    return
  }
  func.func @transform_0(%arg0: i32) -> (i32, i32) {
    %c0_i32 = arith.constant 0 : i32
    %c0_i32_0 = arith.constant 0 : i32
    return %arg0, %c0_i32 : i32, i32
  }
  func.func @transform_1(%arg0: i32) -> (i32, i32) {
    %c0_i32 = arith.constant 0 : i32
    %c0_i32_0 = arith.constant 0 : i32
    %c0_i32_1 = arith.constant 0 : i32
    return %c0_i32, %c0_i32_0 : i32, i32
  }
  func.func @transform_2(%arg0: i32) -> (i32, i32) {
    %c0_i32 = arith.constant 0 : i32
    %c0_i32_0 = arith.constant 0 : i32
    return %arg0, %c0_i32 : i32, i32
  }
}

</mosaic_0001>

<llo_original>
// kernel: _critic_call.1
$region0: #{_critic_call.1}
  #allocation0 [shape = 'u32[]', space=smem, size = 0x4, offset = 0x4, fixed_abs, tag = 'smem constant byte address 0x4 - core index']
  #allocation1 [shape = 'u32[144,128]{1,0:T(1,128)}', space=vmem, size = 0x12000, scoped, tag = 'internal scratch']
  %s0 = inlined_call_operand.vmem [shape: s32[8,1], index: 0, kind: input, shape index: {}]
  %s1 = inlined_call_operand.hbm [shape: f32[128,128], index: 1, kind: input, shape index: {}]
  %s2 = inlined_call_operand.vmem [shape: f32[8,1], index: 2, kind: output, shape index: {}]
  %s3 = sld [smem:[#allocation0]]
  $region22: #{_critic_call.1} parent=0
    _
  %s5 = ssub.s32 1, %s3
  %s6 = scalar_select 0, %s5, %s3
  $region1: #{_critic_call.1} parent=0
    #allocation2 [shape = 'u8[65536]{0}', space=vmem, size = 0x10000, scoped, tag = 'input window, operand 1, single buffered']
    #allocation3 [shape = 's32[1]{0}', space=sflag, size = 0x4, scoped, tag = 'scoped memory for _critic_call.1']
    %7 = vsyncpa [#allocation3], 0
    // Predicated region
    $region2: #{_critic_call.1} parent=1 // pred_check
      _
    $region3: #{_critic_call.1} parent=1 // pred_check_branch
      %9 = sbr.rel (0) target = $region5
    $region4: #{_critic_call.1} parent=1 // pred_region
      _
    $region5: #{_critic_call.1} parent=1 // pred_fallthru
      _
    // Predicated region
    $region6: #{_critic_call.1} parent=1 // pred_check
      _
    $region7: #{_critic_call.1} parent=1 // pred_check_branch
      %11 = sbr.rel (0) target = $region9
    $region8: #{_critic_call.1} parent=1 // pred_region
      %s13 = ssub.s32 2048, 2048
      %14 = vsyncadd [#allocation3], %s13
      %s15 = sshll.u32 [#allocation2], 4
      %s16 = int_to_ptr.vmem [resolvable:$true] %s15
      %21 = dma.hbm_to_vmem [thread:$0]  %s1, 2048, %s16, [#allocation3], 128, 128, 8
    $region9: #{_critic_call.1} parent=1 // pred_fallthru
      _
    // Predicated region
    $region10: #{_critic_call.1} parent=1 // pred_check
      _
    $region11: #{_critic_call.1} parent=1 // pred_check_branch
      %23 = sbr.rel (0) target = $region13
    $region12: #{_critic_call.1} parent=1 // pred_region
      %24 = dma.done [#allocation3], 2048
    $region13: #{_critic_call.1} parent=1 // pred_fallthru
      _
    %v25 = vld [vmem:[%s0] sm:$0xff]
    %v26 = vlaneseq
    %v27 = vand.u32 %v26, 127
    %28 = vset.pattern.permute.xlu0 0
    %29 = vperm.xlu0 %28, %v25
    %v30 = vpop.permute.xlu0 %29
    %vm31 = vcmp.eq.s32.totalorder %v27, %v30
    %v32 = vsel %vm31, 1, 0
    %v33 = vcvt.s32.f32 %v32
    %v34 = vld [vmem:[#allocation2] sm:$0xff]
    %v35 = vld [vmem:[#allocation2 + $0x8] sm:$0xff]
    %v36 = vld [vmem:[#allocation2 + $0x10] sm:$0xff]
    %v37 = vld [vmem:[#allocation2 + $0x18] sm:$0xff]
    %v38 = vld [vmem:[#allocation2 + $0x20] sm:$0xff]
    %v39 = vld [vmem:[#allocation2 + $0x28] sm:$0xff]
    %v40 = vld [vmem:[#allocation2 + $0x30] sm:$0xff]
    %v41 = vld [vmem:[#allocation2 + $0x38] sm:$0xff]
    %v42 = vld [vmem:[#allocation2 + $0x40] sm:$0xff]
    %v43 = vld [vmem:[#allocation2 + $0x48] sm:$0xff]
    %v44 = vld [vmem:[#allocation2 + $0x50] sm:$0xff]
    %v45 = vld [vmem:[#allocation2 + $0x58] sm:$0xff]
    %v46 = vld [vmem:[#allocation2 + $0x60] sm:$0xff]
    %v47 = vld [vmem:[#allocation2 + $0x68] sm:$0xff]
    %v48 = vld [vmem:[#allocation2 + $0x70] sm:$0xff]
    %v49 = vld [vmem:[#allocation2 + $0x78] sm:$0xff]
    %v50 = vld [vmem:[#allocation2] sm:$0xff]
    %v51 = vld [vmem:[#allocation2 + $0x8] sm:$0xff]
    %v52 = vld [vmem:[#allocation2 + $0x10] sm:$0xff]
    %v53 = vld [vmem:[#allocation2 + $0x18] sm:$0xff]
    %v54 = vld [vmem:[#allocation2] sm:$0x1]
    %v55 = vld [vmem:[#allocation2] sm:$0x3]
    %56 = vmatprep.subr.mxu0 0.0
    %57 = vmatpush1.msra.mxu0 %v34
    %58 = vmatprep.subr.mxu0 0.0
    %59 = vmatpush1.msra.mxu0 %v35
    %60 = vmatprep.subr.mxu0 0.0
    %61 = vmatpush1.msra.mxu0 %v36
    %62 = vmatprep.subr.mxu0 0.0
    %63 = vmatpush1.msra.mxu0 %v37
    %64 = vmatprep.subr.mxu0 0.0
    %65 = vmatpush1.msra.mxu0 %v38
    %66 = vmatprep.subr.mxu0 0.0
    %67 = vmatpush1.msra.mxu0 %v39
    %68 = vmatprep.subr.mxu0 0.0
    %69 = vmatpush1.msra.mxu0 %v40
    %70 = vmatprep.subr.mxu0 0.0
    %71 = vmatpush1.msra.mxu0 %v41
    %72 = vmatprep.subr.mxu0 0.0
    %73 = vmatpush1.msra.mxu0 %v42
    %74 = vmatprep.subr.mxu0 0.0
    %75 = vmatpush1.msra.mxu0 %v43
    %76 = vmatprep.subr.mxu0 0.0
    %77 = vmatpush1.msra.mxu0 %v44
    %78 = vmatprep.subr.mxu0 0.0
    %79 = vmatpush1.msra.mxu0 %v45
    %80 = vmatprep.subr.mxu0 0.0
    %81 = vmatpush1.msra.mxu0 %v46
    %82 = vmatprep.subr.mxu0 0.0
    %83 = vmatpush1.msra.mxu0 %v47
    %84 = vmatprep.subr.mxu0 0.0
    %85 = vmatpush1.msra.mxu0 %v48
    %86 = vmatprep.subr.mxu0 0.0
    %87 = vmatpush1.msra.mxu0 %v49
    %88 = vmatprep.subr.mxu0 0.0
    %89 = vmatpush1.msra.mxu0 0.0
    %90 = vmatprep.subr.mxu0 0.0
    %91 = vmatpush1.msra.mxu0 0.0
    %92 = vmatprep.subr.mxu0 0.0
    %93 = vmatpush1.msra.mxu0 0.0
    %94 = vmatprep.subr.mxu0 0.0
    %95 = vmatpush1.msra.mxu0 0.0
    %96 = vmatprep.subr.mxu0 0.0
    %97 = vmatpush1.msra.mxu0 0.0
    %98 = vmatprep.subr.mxu0 0.0
    %99 = vmatpush1.msra.mxu0 0.0
    %100 = vmatprep.subr.mxu0 0.0
    %101 = vmatpush1.msra.mxu0 0.0
    %102 = vmatprep.subr.mxu0 0.0
    %103 = vmatpush1.msra.mxu0 0.0
    %104 = vmatprep.subr.mxu0 0.0
    %105 = vmatpush1.msra.mxu0 0.0
    %106 = vmatprep.subr.mxu0 0.0
    %107 = vmatpush1.msra.mxu0 0.0
    %108 = vmatprep.subr.mxu0 0.0
    %109 = vmatpush1.msra.mxu0 0.0
    %110 = vmatprep.subr.mxu0 0.0
    %111 = vmatpush1.msra.mxu0 0.0
    %112 = vmatprep.subr.mxu0 0.0
    %113 = vmatpush1.msra.mxu0 0.0
    %114 = vmatprep.subr.mxu0 0.0
    %115 = vmatpush1.msra.mxu0 0.0
    %116 = vmatprep.subr.mxu0 0.0
    %117 = vmatpush1.msra.mxu0 0.0
    %118 = vmatprep.subr.mxu0 0.0
    %119 = vmatpush1.msra.mxu0 0.0
    %120 = vmatprep.mubr.f32.mxu0 0.0
    %121 = vmatmul.mubr.f32.gmra.mrb[0].mxu0 %v33
    %v122 = vpop.f32.mrb[0].mxu0
    %v123 = vadd.f32 0.0, %v122
    %v124 = vpop.f32.mrb[0].mxu0
    %125 = vdwg.mxu0
    %v126 = vtanh.pop %v123
    %v127 = vlaneseq
    %v128 = vshrl.u32 %v127, 7
    %v129 = vsub.s32 0, %v128
    %v130 = vrot.slane %v54, %v129
    %135 = vrot.lane.b32.xlu0 %v50, 96
    %v136 = vpop.permute.xlu0 %135
    %137 = vrot.lane.b32.xlu0 %v51, 96
    %v138 = vpop.permute.xlu0 %137
    %139 = vrot.lane.b32.xlu0 %v52, 96
    %v140 = vpop.permute.xlu0 %139
    %141 = vrot.lane.b32.xlu0 %v53, 96
    %v142 = vpop.permute.xlu0 %141
    %148 = vrot.lane.b32.xlu0 %v130, 64
    %v149 = vpop.permute.xlu0 %148
    %vm151 = vcmask 261120
    %v153 = vsel %vm151, %v126, 0
    %155 = vmatprep.subr.mxu0 0.0
    %156 = vmatpush1.msra.mxu0 %v136
    %157 = vmatprep.subr.mxu0 0.0
    %158 = vmatpush1.msra.mxu0 %v138
    %159 = vmatprep.subr.mxu0 0.0
    %160 = vmatpush1.msra.mxu0 %v140
    %161 = vmatprep.subr.mxu0 0.0
    %162 = vmatpush1.msra.mxu0 %v142
    %163 = vmatprep.subr.mxu0 0.0
    %164 = vmatpush1.msra.mxu0 0.0
    %165 = vmatprep.subr.mxu0 0.0
    %166 = vmatpush1.msra.mxu0 0.0
    %167 = vmatprep.subr.mxu0 0.0
    %168 = vmatpush1.msra.mxu0 0.0
    %169 = vmatprep.subr.mxu0 0.0
    %170 = vmatpush1.msra.mxu0 0.0
    %171 = vmatprep.subr.mxu0 0.0
    %172 = vmatpush1.msra.mxu0 0.0
    %173 = vmatprep.subr.mxu0 0.0
    %174 = vmatpush1.msra.mxu0 0.0
    %175 = vmatprep.subr.mxu0 0.0
    %176 = vmatpush1.msra.mxu0 0.0
    %177 = vmatprep.subr.mxu0 0.0
    %178 = vmatpush1.msra.mxu0 0.0
    %179 = vmatprep.subr.mxu0 0.0
    %180 = vmatpush1.msra.mxu0 0.0
    %181 = vmatprep.subr.mxu0 0.0
    %182 = vmatpush1.msra.mxu0 0.0
    %183 = vmatprep.subr.mxu0 0.0
    %184 = vmatpush1.msra.mxu0 0.0
    %185 = vmatprep.subr.mxu0 0.0
    %186 = vmatpush1.msra.mxu0 0.0
    %187 = vmatprep.subr.mxu0 0.0
    %188 = vmatpush1.msra.mxu0 0.0
    %189 = vmatprep.subr.mxu0 0.0
    %190 = vmatpush1.msra.mxu0 0.0
    %191 = vmatprep.subr.mxu0 0.0
    %192 = vmatpush1.msra.mxu0 0.0
    %193 = vmatprep.subr.mxu0 0.0
    %194 = vmatpush1.msra.mxu0 0.0
    %195 = vmatprep.subr.mxu0 0.0
    %196 = vmatpush1.msra.mxu0 0.0
    %197 = vmatprep.subr.mxu0 0.0
    %198 = vmatpush1.msra.mxu0 0.0
    %199 = vmatprep.subr.mxu0 0.0
    %200 = vmatpush1.msra.mxu0 0.0
    %201 = vmatprep.subr.mxu0 0.0
    %202 = vmatpush1.msra.mxu0 0.0
    %203 = vmatprep.subr.mxu0 0.0
    %204 = vmatpush1.msra.mxu0 0.0
    %205 = vmatprep.subr.mxu0 0.0
    %206 = vmatpush1.msra.mxu0 0.0
    %207 = vmatprep.subr.mxu0 0.0
    %208 = vmatpush1.msra.mxu0 0.0
    %209 = vmatprep.subr.mxu0 0.0
    %210 = vmatpush1.msra.mxu0 0.0
    %211 = vmatprep.subr.mxu0 0.0
    %212 = vmatpush1.msra.mxu0 0.0
    %213 = vmatprep.subr.mxu0 0.0
    %214 = vmatpush1.msra.mxu0 0.0
    %215 = vmatprep.subr.mxu0 0.0
    %216 = vmatpush1.msra.mxu0 0.0
    %217 = vmatprep.subr.mxu0 0.0
    %218 = vmatpush1.msra.mxu0 0.0
    %219 = vmatprep.mubr.f32.mxu0 0.0
    %220 = vmatmul.mubr.f32.gmra.mrb[0].mxu0 %v153
    %v221 = vpop.f32.mrb[0].mxu0
    %v222 = vadd.f32 %v149, %v221
    %v223 = vpop.f32.mrb[0].mxu0
    %224 = vdwg.mxu0
    %v225 = vtanh.pop %v222
    %v226 = vlaneseq
    %v227 = vshrl.u32 %v226, 7
    %v228 = vsub.s32 0, %v227
    %v229 = vrot.slane %v55, %v228
    %231 = vrot.lane.b32.xlu0 %v229, 32
    %v232 = vpop.permute.xlu0 %231
    %v234 = vmul.f32 %v225, %v232
    %v235 = vsel %vm151, %v234, 0.0
    %236 = vadd.xlane.f32.xlu0 %v235
    %v237 = vpop.xlane.xlu0 %236
    %v238 = vlaneseq
    %v239 = vshrl.u32 %v238, 7
    %v240 = vsub.s32 1, %v239
    %v241 = vrot.slane %v55, %v240
    %v242 = vadd.f32 %v237, %v241
    %244 = vrot.lane.b32.xlu0 %v242, 32
    %v245 = vpop.permute.xlu0 %244
    %vm247 = vcmask 7168
    %248 = vst.msk [vmem:[%s2] sm:$0xff] %vm247, %v245
    // Predicated region
    $region14: #{_critic_call.1} parent=1 // pred_check
      _
    $region15: #{_critic_call.1} parent=1 // pred_check_branch
      %250 = sbr.rel (0) target = $region17
    $region16: #{_critic_call.1} parent=1 // pred_region
      _
    $region17: #{_critic_call.1} parent=1 // pred_fallthru
      _
    // Predicated region
    $region18: #{_critic_call.1} parent=1 // pred_check
      _
    $region19: #{_critic_call.1} parent=1 // pred_check_branch
      %252 = sbr.rel (0) target = $region21
    $region20: #{_critic_call.1} parent=1 // pred_region
      _
    $region21: #{_critic_call.1} parent=1 // pred_fallthru
      _
    %253 = vsyncpa [#allocation3], 1

</llo_original>
